<compile_context>
chip_gen: v7x
topology: tpu7x:2x2x1
jax: 0.10.0
libtpu: 0.0.40
codegen_flags: <defaults>
</compile_context>

<pallas_src>
import jax
import jax.numpy as jnp
from jax.experimental import pallas as pl
from jax.experimental.pallas import tpu as pltpu


def _round_up(x, m):
    return (x + m - 1) // m * m


def _clusterer_kernel(z_ref, a_ref, b_ref, const_ref, o_ref):
    # z tile: (TM, D).  Cast to the MXU operand dtype in-kernel (no-op for f32,
    # cheap VPU pack for bf16 on chips with bf16 VALUs).
    z = z_ref[...].astype(a_ref.dtype)                           # (TM, D)
    zz = z * z                                                   # (TM, D)

    # logits = -dist = zz @ (-inv)^T + z @ (2*c*inv)^T - sum(c^2*inv)
    # Two small MXU contractions with f32 accumulation; sign already folded
    # into the precomputed A / B / const, so no full-tile negate is needed.
    logits = jnp.dot(zz, a_ref[...], preferred_element_type=jnp.float32)
    logits = logits + jnp.dot(z, b_ref[...], preferred_element_type=jnp.float32)
    logits = logits + const_ref[...]                             # (1, K) broadcast

    # Numerically stable softmax over the (true, unpadded) cluster axis.
    # Exact divide: memberships sum to 1 to f32 rounding; the kernel is
    # memory/step-overhead bound so this costs nothing measurable.
    m = jnp.max(logits, axis=-1, keepdims=True)
    e = jnp.exp(logits - m)
    denom = jnp.sum(e, axis=-1, keepdims=True)
    o_ref[...] = (e / denom).astype(o_ref.dtype)


def parametric_clusterer(z, centroids, log_sigma, *,
                         min_sigma=0.0, max_sigma=20.0,
                         block_m=2048, compute_dtype=jnp.float32):
    """z: (N, D), centroids: (K, D), log_sigma: (K, D)  ->  memberships (N, K) f32."""
    N, D = z.shape
    K, Dc = centroids.shape
    assert D == Dc and log_sigma.shape == (K, D)
    f32 = jnp.float32

    # ---- Hoisted, grid-invariant parameter prep (runs once per call) --------
    # TODO(synk): min_sigma=0.0 (module default) lets sigma clamp to 0 if
    # exp(log_sigma) underflows -> inf/NaN logits, matching the PyTorch ref.
    sigma = jnp.clip(jnp.exp(log_sigma.astype(f32)), min_sigma, max_sigma)    # (K, D)
    inv = 0.5 / sigma                                                         # (K, D)
    c = centroids.astype(f32)
    a_mat = (-inv).T.astype(compute_dtype)                                    # (D, K)
    b_mat = (2.0 * c * inv).T.astype(compute_dtype)                           # (D, K)
    const = (-jnp.sum(c * c * inv, axis=-1))[None, :]                         # (1, K) f32

    # ---- Row tiling ----------------------------------------------------------
    # Big tiles amortize the ~0.35 us fixed per-grid-step overhead; capping at
    # ~ceil(N/2) keeps >= 2 grid steps so the "parallel" axis can be sharded
    # across the 2 TensorCores on v7x (harmless on single-TC v5e/v6e).
    half = _round_up(max(pl.cdiv(N, 2), 8), 8)
    block_m_eff = max(8, min(_round_up(int(block_m), 8), half))
    grid = (pl.cdiv(N, block_m_eff),)     # boundary block masked by Pallas

    out = pl.pallas_call(
        _clusterer_kernel,
        out_shape=jax.ShapeDtypeStruct((N, K), f32),
        grid=grid,
        in_specs=[
            pl.BlockSpec((block_m_eff, D), lambda i: (i, 0)),   # z row tile
            pl.BlockSpec((D, K), lambda i: (0, 0)),             # A = -inv^T (resident)
            pl.BlockSpec((D, K), lambda i: (0, 0)),             # B = (2 c inv)^T (resident)
            pl.BlockSpec((1, K), lambda i: (0, 0)),             # const (resident)
        ],
        out_specs=pl.BlockSpec((block_m_eff, K), lambda i: (i, 0)),
        compiler_params=pltpu.CompilerParams(
            dimension_semantics=("parallel",)),
    )(z, a_mat, b_mat, const)

    return out


def _reference(z, centroids, log_sigma, min_sigma=0.0, max_sigma=20.0):
    sigma = jnp.clip(jnp.exp(log_sigma), min_sigma, max_sigma)
    diff = z[:, None, :] - centroids[None, :, :]
    dist_sq = 0.5 * diff * diff / sigma[None, :, :]
    logits = -jnp.sum(dist_sq, axis=-1)
    return jax.nn.softmax(logits, axis=1)


if __name__ == "__main__":
    # Module hyper-params (small, consistent with the nn.Module __init__).
    n_clusters = 4
    latent_dim = 32
    initial_sigma = 4.0
    min_sigma, max_sigma = 0.0, 20.0
    batch = 16

    key = jax.random.PRNGKey(0)
    k_c, k_z, k_s, k_z2 = jax.random.split(key, 4)

    # torch.randn(K, D) * 0.01  /  torch.full((K, D), initial_sigma)
    centroids = 0.01 * jax.random.normal(k_c, (n_clusters, latent_dim), jnp.float32)
    log_sigma = jnp.full((n_clusters, latent_dim), initial_sigma, jnp.float32)
    z = jax.random.normal(k_z, (batch, latent_dim), jnp.float32)

    ref = _reference(z, centroids, log_sigma, min_sigma, max_sigma)

    # 1) Default path: f32 MXU operands, exact softmax divide.
    out = parametric_clusterer(z, centroids, log_sigma,
                               min_sigma=min_sigma, max_sigma=max_sigma)
    out = jax.block_until_ready(out)
    assert out.shape == (batch, n_clusters) and out.dtype == jnp.float32
    assert jnp.allclose(jnp.sum(out, axis=1), 1.0, atol=1e-4), "rows not normalized"
    assert jnp.allclose(out, ref, rtol=5e-3, atol=2e-3), "f32 path mismatch"

    # 2) bf16 MXU-operand path (f32 accumulation / f32 softmax).
    out_bf = parametric_clusterer(z, centroids, log_sigma,
                                  min_sigma=min_sigma, max_sigma=max_sigma,
                                  compute_dtype=jnp.bfloat16)
    out_bf = jax.block_until_ready(out_bf)
    assert jnp.allclose(out_bf, ref, rtol=2e-2, atol=5e-3), "bf16 path mismatch"

    # 3) Non-degenerate per-cluster sigmas + ragged N (exercises the masked
    #    boundary block and a multi-step grid).
    batch2 = 40
    z2 = jax.random.normal(k_z2, (batch2, latent_dim), jnp.float32)
    log_sigma2 = 0.5 + 0.3 * jax.random.normal(k_s, (n_clusters, latent_dim), jnp.float32)
    ref2 = _reference(z2, centroids, log_sigma2, min_sigma, max_sigma)
    out2 = parametric_clusterer(z2, centroids, log_sigma2,
                                min_sigma=min_sigma, max_sigma=max_sigma,
                                block_m=16)
    out2 = jax.block_until_ready(out2)
    assert out2.shape == (batch2, n_clusters)
    assert jnp.allclose(out2, ref2, rtol=1e-2, atol=3e-3), "ragged/grid path mismatch"

    print("KERNEL_OK")
</pallas_src>

<mosaic_0001>
module attributes {stable_mosaic.version = 11 : i64} {
  func.func @_clusterer_kernel(%arg0: i32, %arg1: memref<8x32xf32, #tpu.memory_space<vmem>>, %arg2: memref<32x4xf32, #tpu.memory_space<vmem>>, %arg3: memref<32x4xf32, #tpu.memory_space<vmem>>, %arg4: memref<1x4xf32, #tpu.memory_space<vmem>>, %arg5: memref<8x4xf32, #tpu.memory_space<vmem>>) attributes {dimension_semantics = [#tpu.dimension_semantics<parallel>], iteration_bounds = array<i64: 2>, scalar_prefetch = 0 : i64, scratch_operands = 0 : i64, tpu.core_type = #tpu.core_type<tc>, window_params = [{transform_indices = @transform_0, window_bounds = array<i64: 8, 32>}, {pipeline_mode = #tpu.pipeline_mode<synchronous>, transform_indices = @transform_1, window_bounds = array<i64: 32, 4>}, {pipeline_mode = #tpu.pipeline_mode<synchronous>, transform_indices = @transform_2, window_bounds = array<i64: 32, 4>}, {pipeline_mode = #tpu.pipeline_mode<synchronous>, transform_indices = @transform_3, window_bounds = array<i64: 1, 4>}, {transform_indices = @transform_4, window_bounds = array<i64: 8, 4>}]} {
    %c0 = arith.constant 0 : index
    %c0_0 = arith.constant 0 : index
    %0 = vector.load %arg1[%c0, %c0_0] : memref<8x32xf32, #tpu.memory_space<vmem>>, vector<8x32xf32>
    %1 = arith.mulf %0, %0 : vector<8x32xf32>
    %c0_1 = arith.constant 0 : index
    %c0_2 = arith.constant 0 : index
    %2 = vector.load %arg2[%c0_1, %c0_2] : memref<32x4xf32, #tpu.memory_space<vmem>>, vector<32x4xf32>
    %cst = arith.constant dense<0.000000e+00> : vector<8x4xf32>
    %3 = tpu.matmul %1, %2, %cst {dimension_numbers = #tpu.dot_dimension_numbers<[1], [0], [0], [1], [0, 0, 1, 1], [], []>} : vector<8x32xf32>, vector<32x4xf32>, vector<8x4xf32> -> vector<8x4xf32>
    %c0_3 = arith.constant 0 : index
    %c0_4 = arith.constant 0 : index
    %4 = vector.load %arg3[%c0_3, %c0_4] : memref<32x4xf32, #tpu.memory_space<vmem>>, vector<32x4xf32>
    %cst_5 = arith.constant dense<0.000000e+00> : vector<8x4xf32>
    %5 = tpu.matmul %0, %4, %cst_5 {dimension_numbers = #tpu.dot_dimension_numbers<[1], [0], [0], [1], [0, 0, 1, 1], [], []>} : vector<8x32xf32>, vector<32x4xf32>, vector<8x4xf32> -> vector<8x4xf32>
    %6 = arith.addf %3, %5 : vector<8x4xf32>
    %c0_6 = arith.constant 0 : index
    %c0_7 = arith.constant 0 : index
    %7 = vector.load %arg4[%c0_6, %c0_7] : memref<1x4xf32, #tpu.memory_space<vmem>>, vector<1x4xf32>
    %8 = vector.broadcast %7 : vector<1x4xf32> to vector<8x4xf32>
    %9 = arith.addf %6, %8 : vector<8x4xf32>
    %cst_8 = arith.constant dense<0xFF800000> : vector<8xf32>
    %10 = vector.multi_reduction <maximumf>, %9, %cst_8 [1] : vector<8x4xf32> to vector<8xf32>
    %11 = vector.shape_cast %10 : vector<8xf32> to vector<8x1xf32>
    %12 = vector.broadcast %11 : vector<8x1xf32> to vector<8x4xf32>
    %13 = arith.subf %9, %12 : vector<8x4xf32>
    %14 = math.exp %13 : vector<8x4xf32>
    %cst_9 = arith.constant dense<0.000000e+00> : vector<8xf32>
    %15 = vector.multi_reduction <add>, %14, %cst_9 [1] : vector<8x4xf32> to vector<8xf32>
    %16 = vector.shape_cast %15 : vector<8xf32> to vector<8x1xf32>
    %17 = vector.broadcast %16 : vector<8x1xf32> to vector<8x4xf32>
    %18 = arith.divf %14, %17 : vector<8x4xf32>
    %c0_10 = arith.constant 0 : index
    %c0_11 = arith.constant 0 : index
    %19 = vector.load %arg5[%c0_10, %c0_11] : memref<8x4xf32, #tpu.memory_space<vmem>>, vector<8x4xf32>
    tpu.vector_store %arg5[%c0_10, %c0_11], %18 {strides = array<i32>} : memref<8x4xf32, #tpu.memory_space<vmem>>, vector<8x4xf32>,
    return
  }
  func.func @transform_0(%arg0: i32) -> (i32, i32) {
    %c0_i32 = arith.constant 0 : i32
    %c0_i32_0 = arith.constant 0 : i32
    return %arg0, %c0_i32 : i32, i32
  }
  func.func @transform_1(%arg0: i32) -> (i32, i32) {
    %c0_i32 = arith.constant 0 : i32
    %c0_i32_0 = arith.constant 0 : i32
    %c0_i32_1 = arith.constant 0 : i32
    return %c0_i32, %c0_i32_0 : i32, i32
  }
  func.func @transform_2(%arg0: i32) -> (i32, i32) {
    %c0_i32 = arith.constant 0 : i32
    %c0_i32_0 = arith.constant 0 : i32
    %c0_i32_1 = arith.constant 0 : i32
    return %c0_i32, %c0_i32_0 : i32, i32
  }
  func.func @transform_3(%arg0: i32) -> (i32, i32) {
    %c0_i32 = arith.constant 0 : i32
    %c0_i32_0 = arith.constant 0 : i32
    %c0_i32_1 = arith.constant 0 : i32
    return %c0_i32, %c0_i32_0 : i32, i32
  }
  func.func @transform_4(%arg0: i32) -> (i32, i32) {
    %c0_i32 = arith.constant 0 : i32
    %c0_i32_0 = arith.constant 0 : i32
    return %arg0, %c0_i32 : i32, i32
  }
}

</mosaic_0001>

<llo_original>
// kernel: tpu_custom_call.1
$region0: #{tpu_custom_call.1}
  #allocation0 [shape = 'u32[]', space=smem, size = 0x4, offset = 0x4, fixed_abs, tag = 'smem constant byte address 0x4 - core index']
  #allocation1 [shape = 'u32[144,128]{1,0:T(1,128)}', space=vmem, size = 0x12000, scoped, tag = 'internal scratch']
  %s0 = inlined_call_operand.vmem [shape: f32[16,32], index: 0, kind: input, shape index: {}]
  %s1 = inlined_call_operand.vmem [shape: f32[32,4], index: 1, kind: input, shape index: {}]
  %s2 = inlined_call_operand.vmem [shape: f32[32,4], index: 2, kind: input, shape index: {}]
  %s3 = inlined_call_operand.vmem [shape: f32[1,4], index: 3, kind: input, shape index: {}]
  %s4 = inlined_call_operand.vmem [shape: f32[16,4], index: 4, kind: output, shape index: {}]
  %s5 = sld [smem:[#allocation0]]
  $region49: #{tpu_custom_call.1} parent=0
    _
  %s7 = ssub.s32 1, %s5
  %s8 = scalar_select 0, %s7, %s5
  loop: start=0, step=1, limit=4
  $region2: #{tpu_custom_call.1} parent=0 // loop_pre_header
    _
  $region3: #{tpu_custom_call.1} parent=0 // loop_header
    %s10 = sphi 0, %s14
    %p11 = scmp.ge.s32.totalorder %s10, 4
    %s20 = sphi 0, %s22
    %s23 = sphi 0, %s20
    %s24 = sphi 0, %s23
    %s40 = sphi 0, %s24
    %s44 = sphi 0, %s44
    %s46 = sphi 0, %s44
    %s47 = sphi 0, %s46
    %s61 = sphi 0, %s47
    %s65 = sphi 0, %s65
    %s67 = sphi 0, %s65
    %s68 = sphi 0, %s67
    %s82 = sphi 0, %s68
    %s86 = sphi 0, %s86
    %s88 = sphi 0, %s86
    %s89 = sphi 0, %s88
    %s103 = sphi 0, %s89
    %s109 = sphi 0, %s111
    %s112 = sphi 0, %s109
    %s113 = sphi 0, %s112
    %s129 = sphi 0, %s113
  $region4: #{tpu_custom_call.1} parent=0 // loop_header_branch
    %13 = sbr.rel (%p11) target = $region8
  $region5: #{tpu_custom_call.1} parent=0 // loop_body
    %s15 = ssub.s32 %s10, 1
    %s16 = ssub.s32 %s10, 2
    %s17 = sadd.s32 %s10, 1
    %s18 = ssub.s32 %s10, %s17
    %p19 = scmp.eq.s32.totalorder %s18, 0
    %s21 = sadd.s32 %s20, 1
    %s22 = scalar_select %p19, %s20, %s21
    %p25 = pneg %p19
    %p26 = scmp.eq.s32.totalorder %s10, 1
    %p27 = por %p25, %p26
    %p28 = scmp.ne.s32.totalorder %s20, %s23
    %p29 = scmp.eq.s32.totalorder %s10, 0
    %p30 = por %p28, %p29
    %p31 = scmp.ne.s32.totalorder %s20, %s23
    %p32 = scmp.eq.s32.totalorder %s15, 1
    %p33 = por %p31, %p32
    %p34 = scmp.ne.s32.totalorder %s23, %s24
    %p35 = scmp.eq.s32.totalorder %s15, 0
    %p36 = por %p34, %p35
    %p37 = scmp.ne.s32.totalorder %s23, %s24
    %p38 = scmp.eq.s32.totalorder %s16, 1
    %p39 = por %p37, %p38
    %p41 = scmp.ne.s32.totalorder %s24, %s40
    %p42 = scmp.eq.s32.totalorder %s16, 0
    %p43 = por %p41, %p42
    %s45 = sadd.s32 %s44, 1
    %p48 = scmp.eq.s32.totalorder %s10, 1
    %p49 = scmp.ne.s32.totalorder %s44, %s46
    %p50 = scmp.eq.s32.totalorder %s10, 0
    %p51 = por %p49, %p50
    %p52 = scmp.ne.s32.totalorder %s44, %s46
    %p53 = scmp.eq.s32.totalorder %s15, 1
    %p54 = por %p52, %p53
    %p55 = scmp.ne.s32.totalorder %s46, %s47
    %p56 = scmp.eq.s32.totalorder %s15, 0
    %p57 = por %p55, %p56
    %p58 = scmp.ne.s32.totalorder %s46, %s47
    %p59 = scmp.eq.s32.totalorder %s16, 1
    %p60 = por %p58, %p59
    %p62 = scmp.ne.s32.totalorder %s47, %s61
    %p63 = scmp.eq.s32.totalorder %s16, 0
    %p64 = por %p62, %p63
    %s66 = sadd.s32 %s65, 1
    %p69 = scmp.eq.s32.totalorder %s10, 1
    %p70 = scmp.ne.s32.totalorder %s65, %s67
    %p71 = scmp.eq.s32.totalorder %s10, 0
    %p72 = por %p70, %p71
    %p73 = scmp.ne.s32.totalorder %s65, %s67
    %p74 = scmp.eq.s32.totalorder %s15, 1
    %p75 = por %p73, %p74
    %p76 = scmp.ne.s32.totalorder %s67, %s68
    %p77 = scmp.eq.s32.totalorder %s15, 0
    %p78 = por %p76, %p77
    %p79 = scmp.ne.s32.totalorder %s67, %s68
    %p80 = scmp.eq.s32.totalorder %s16, 1
    %p81 = por %p79, %p80
    %p83 = scmp.ne.s32.totalorder %s68, %s82
    %p84 = scmp.eq.s32.totalorder %s16, 0
    %p85 = por %p83, %p84
    %s87 = sadd.s32 %s86, 1
    %p90 = scmp.eq.s32.totalorder %s10, 1
    %p91 = scmp.ne.s32.totalorder %s86, %s88
    %p92 = scmp.eq.s32.totalorder %s10, 0
    %p93 = por %p91, %p92
    %p94 = scmp.ne.s32.totalorder %s86, %s88
    %p95 = scmp.eq.s32.totalorder %s15, 1
    %p96 = por %p94, %p95
    %p97 = scmp.ne.s32.totalorder %s88, %s89
    %p98 = scmp.eq.s32.totalorder %s15, 0
    %p99 = por %p97, %p98
    %p100 = scmp.ne.s32.totalorder %s88, %s89
    %p101 = scmp.eq.s32.totalorder %s16, 1
    %p102 = por %p100, %p101
    %p104 = scmp.ne.s32.totalorder %s89, %s103
    %p105 = scmp.eq.s32.totalorder %s16, 0
    %p106 = por %p104, %p105
    %s107 = ssub.s32 %s10, %s17
    %p108 = scmp.eq.s32.totalorder %s107, 0
    %s110 = sadd.s32 %s109, 1
    %s111 = scalar_select %p108, %s109, %s110
    %p114 = pneg %p108
    %p115 = scmp.eq.s32.totalorder %s10, 1
    %p116 = por %p114, %p115
    %p117 = scmp.ne.s32.totalorder %s109, %s112
    %p118 = scmp.eq.s32.totalorder %s10, 0
    %p119 = por %p117, %p118
    %p120 = scmp.ne.s32.totalorder %s109, %s112
    %p121 = scmp.eq.s32.totalorder %s15, 1
    %p122 = por %p120, %p121
    %p123 = scmp.ne.s32.totalorder %s112, %s113
    %p124 = scmp.eq.s32.totalorder %s15, 0
    %p125 = por %p123, %p124
    %p126 = scmp.ne.s32.totalorder %s112, %s113
    %p127 = scmp.eq.s32.totalorder %s16, 1
    %p128 = por %p126, %p127
    %p130 = scmp.ne.s32.totalorder %s113, %s129
    %p131 = scmp.eq.s32.totalorder %s16, 0
    %p132 = por %p130, %p131
    %p133 = scmp.le.s32.totalorder 1, %s10
    %p134 = scmp.lt.s32.totalorder %s10, 3
    %p135 = pnand %p133, %p134
    %p136 = pneg %p135
    // Predicated region
    $region9: #{tpu_custom_call.1} parent=5 // pred_check
      _
    $region10: #{tpu_custom_call.1} parent=5 // pred_check_branch
      %138 = sbr.rel (%p135) target = $region12
    $region11: #{tpu_custom_call.1} parent=5 // pred_region
      %s139 = ssub.s32 %s10, 1
      // Predicated region
      $region13: #{tpu_custom_call.1} parent=11 // pred_check
        %p140 = pneg %p57
      $region14: #{tpu_custom_call.1} parent=11 // pred_check_branch
        %142 = sbr.rel (%p140) target = $region16
      $region15: #{tpu_custom_call.1} parent=11 // pred_region
        _
      $region16: #{tpu_custom_call.1} parent=11 // pred_fallthru
        _
      // Predicated region
      $region17: #{tpu_custom_call.1} parent=11 // pred_check
        %p143 = pneg %p78
      $region18: #{tpu_custom_call.1} parent=11 // pred_check_branch
        %145 = sbr.rel (%p143) target = $region20
      $region19: #{tpu_custom_call.1} parent=11 // pred_region
        _
      $region20: #{tpu_custom_call.1} parent=11 // pred_fallthru
        _
      // Predicated region
      $region21: #{tpu_custom_call.1} parent=11 // pred_check
        %p146 = pneg %p99
      $region22: #{tpu_custom_call.1} parent=11 // pred_check_branch
        %148 = sbr.rel (%p146) target = $region24
      $region23: #{tpu_custom_call.1} parent=11 // pred_region
        _
      $region24: #{tpu_custom_call.1} parent=11 // pred_fallthru
        _
    $region12: #{tpu_custom_call.1} parent=5 // pred_fallthru
      _
    %p149 = scmp.lt.s32.totalorder %s10, 2
    // Predicated region
    $region25: #{tpu_custom_call.1} parent=5 // pred_check
      %p150 = pneg %p149
    $region26: #{tpu_custom_call.1} parent=5 // pred_check_branch
      %152 = sbr.rel (%p150) target = $region28
    $region27: #{tpu_custom_call.1} parent=5 // pred_region
      // Predicated region
      $region29: #{tpu_custom_call.1} parent=27 // pred_check
        %p153 = pneg %p30
      $region30: #{tpu_custom_call.1} parent=27 // pred_check_branch
        %155 = sbr.rel (%p153) target = $region32
      $region31: #{tpu_custom_call.1} parent=27 // pred_region
        %p156 = scmp.lt.s32.totalorder %s10, 1
        %s157 = scalar_select %p156, %s10, 1
        %s158 = smul.addr %s157, 8
        %s159 = scalar_lea.vmem %s0, %s158
      $region32: #{tpu_custom_call.1} parent=27 // pred_fallthru
        _
    $region28: #{tpu_custom_call.1} parent=5 // pred_fallthru
      _
    %p160 = scmp.le.s32.totalorder 1, %s10
    %p161 = scmp.lt.s32.totalorder %s10, 3
    %p162 = pnand %p160, %p161
    %p163 = pneg %p162
    // Predicated region
    $region33: #{tpu_custom_call.1} parent=5 // pred_check
      _
    $region34: #{tpu_custom_call.1} parent=5 // pred_check_branch
      %165 = sbr.rel (%p162) target = $region36
    $region35: #{tpu_custom_call.1} parent=5 // pred_region
      %s166 = ssub.s32 %s10, 1
      %p167 = scmp.lt.s32.totalorder %s15, 1
      %s168 = scalar_select %p167, %s15, 1
      %s169 = smul.addr %s168, 8
      %s170 = scalar_lea.vmem %s0, %s169
      %p171 = pneg %p36
      %p172 = pneg %p33
      %p173 = pneg %p57
      %p174 = pneg %p54
      %p175 = pneg %p78
      %p176 = pneg %p75
      %p177 = pneg %p99
      %p178 = pneg %p96
      %p179 = pneg %p125
      %p180 = pneg %p122
      %p181 = scmp.lt.s32.totalorder %s15, 1
      %s182 = scalar_select %p181, %s15, 1
      %s183 = smul.addr %s182, 8
      %s184 = scalar_lea.vmem %s4, %s183
      %p185 = scmp.lt.s32.totalorder %s15, 1
      %s186 = scalar_select %p185, %s15, 1
      %s187 = smul.addr %s186, 8
      %s188 = scalar_lea.vmem %s0, %s187
      %p189 = scmp.lt.s32.totalorder %s15, 1
      %s190 = scalar_select %p189, %s15, 1
      %s191 = smul.addr %s190, 8
      %s192 = scalar_lea.vmem %s4, %s191
      %v193 = vld [vmem:[%s188] sm:$0xff]
      %v194 = vmul.f32 %v193, %v193
      %v195 = vld [vmem:[%s1] sm:$0xff]
      %v196 = vld [vmem:[%s1 + $0x8] sm:$0xff]
      %v197 = vld [vmem:[%s1 + $0x10] sm:$0xff]
      %v198 = vld [vmem:[%s1 + $0x18] sm:$0xff]
      %v199 = vld [vmem:[%s2] sm:$0xff]
      %v200 = vld [vmem:[%s2 + $0x8] sm:$0xff]
      %v201 = vld [vmem:[%s2 + $0x10] sm:$0xff]
      %v202 = vld [vmem:[%s2 + $0x18] sm:$0xff]
      %vm203 = vcmask 261120
      %v205 = vsel %vm203, %v193, 0
      %207 = vmatprep.subr.mxu0 0.0
      %208 = vmatpush1.msra.mxu0 %v199
      %209 = vmatprep.subr.mxu0 0.0
      %210 = vmatpush1.msra.mxu0 %v200
      %211 = vmatprep.subr.mxu0 0.0
      %212 = vmatpush1.msra.mxu0 %v201
      %213 = vmatprep.subr.mxu0 0.0
      %214 = vmatpush1.msra.mxu0 %v202
      %215 = vmatprep.subr.mxu0 0.0
      %216 = vmatpush1.msra.mxu0 0.0
      %217 = vmatprep.subr.mxu0 0.0
      %218 = vmatpush1.msra.mxu0 0.0
      %219 = vmatprep.subr.mxu0 0.0
      %220 = vmatpush1.msra.mxu0 0.0
      %221 = vmatprep.subr.mxu0 0.0
      %222 = vmatpush1.msra.mxu0 0.0
      %223 = vmatprep.subr.mxu0 0.0
      %224 = vmatpush1.msra.mxu0 0.0
      %225 = vmatprep.subr.mxu0 0.0
      %226 = vmatpush1.msra.mxu0 0.0
      %227 = vmatprep.subr.mxu0 0.0
      %228 = vmatpush1.msra.mxu0 0.0
      %229 = vmatprep.subr.mxu0 0.0
      %230 = vmatpush1.msra.mxu0 0.0
      %231 = vmatprep.subr.mxu0 0.0
      %232 = vmatpush1.msra.mxu0 0.0
      %233 = vmatprep.subr.mxu0 0.0
      %234 = vmatpush1.msra.mxu0 0.0
      %235 = vmatprep.subr.mxu0 0.0
      %236 = vmatpush1.msra.mxu0 0.0
      %237 = vmatprep.subr.mxu0 0.0
      %238 = vmatpush1.msra.mxu0 0.0
      %239 = vmatprep.subr.mxu0 0.0
      %240 = vmatpush1.msra.mxu0 0.0
      %241 = vmatprep.subr.mxu0 0.0
      %242 = vmatpush1.msra.mxu0 0.0
      %243 = vmatprep.subr.mxu0 0.0
      %244 = vmatpush1.msra.mxu0 0.0
      %245 = vmatprep.subr.mxu0 0.0
      %246 = vmatpush1.msra.mxu0 0.0
      %247 = vmatprep.subr.mxu0 0.0
      %248 = vmatpush1.msra.mxu0 0.0
      %249 = vmatprep.subr.mxu0 0.0
      %250 = vmatpush1.msra.mxu0 0.0
      %251 = vmatprep.subr.mxu0 0.0
      %252 = vmatpush1.msra.mxu0 0.0
      %253 = vmatprep.subr.mxu0 0.0
      %254 = vmatpush1.msra.mxu0 0.0
      %255 = vmatprep.subr.mxu0 0.0
      %256 = vmatpush1.msra.mxu0 0.0
      %257 = vmatprep.subr.mxu0 0.0
      %258 = vmatpush1.msra.mxu0 0.0
      %259 = vmatprep.subr.mxu0 0.0
      %260 = vmatpush1.msra.mxu0 0.0
      %261 = vmatprep.subr.mxu0 0.0
      %262 = vmatpush1.msra.mxu0 0.0
      %263 = vmatprep.subr.mxu0 0.0
      %264 = vmatpush1.msra.mxu0 0.0
      %265 = vmatprep.subr.mxu0 0.0
      %266 = vmatpush1.msra.mxu0 0.0
      %267 = vmatprep.subr.mxu0 0.0
      %268 = vmatpush1.msra.mxu0 0.0
      %269 = vmatprep.subr.mxu0 0.0
      %270 = vmatpush1.msra.mxu0 0.0
      %271 = vmatprep.mubr.f32.mxu0 0.0
      %272 = vmatmul.mubr.f32.gmra.mrb[0].mxu0 %v205
      %v273 = vpop.f32.mrb[0].mxu0
      %v274 = vadd.f32 0.0, %v273
      %v275 = vpop.f32.mrb[0].mxu0
      %276 = vdwg.mxu0
      %v278 = vsel %vm203, %v194, 0
      %280 = vmatprep.subr.mxu0 0.0
      %281 = vmatpush1.msra.mxu0 %v195
      %282 = vmatprep.subr.mxu0 0.0
      %283 = vmatpush1.msra.mxu0 %v196
      %284 = vmatprep.subr.mxu0 0.0
      %285 = vmatpush1.msra.mxu0 %v197
      %286 = vmatprep.subr.mxu0 0.0
      %287 = vmatpush1.msra.mxu0 %v198
      %288 = vmatprep.subr.mxu0 0.0
      %289 = vmatpush1.msra.mxu0 0.0
      %290 = vmatprep.subr.mxu0 0.0
      %291 = vmatpush1.msra.mxu0 0.0
      %292 = vmatprep.subr.mxu0 0.0
      %293 = vmatpush1.msra.mxu0 0.0
      %294 = vmatprep.subr.mxu0 0.0
      %295 = vmatpush1.msra.mxu0 0.0
      %296 = vmatprep.subr.mxu0 0.0
      %297 = vmatpush1.msra.mxu0 0.0
      %298 = vmatprep.subr.mxu0 0.0
      %299 = vmatpush1.msra.mxu0 0.0
      %300 = vmatprep.subr.mxu0 0.0
      %301 = vmatpush1.msra.mxu0 0.0
      %302 = vmatprep.subr.mxu0 0.0
      %303 = vmatpush1.msra.mxu0 0.0
      %304 = vmatprep.subr.mxu0 0.0
      %305 = vmatpush1.msra.mxu0 0.0
      %306 = vmatprep.subr.mxu0 0.0
      %307 = vmatpush1.msra.mxu0 0.0
      %308 = vmatprep.subr.mxu0 0.0
      %309 = vmatpush1.msra.mxu0 0.0
      %310 = vmatprep.subr.mxu0 0.0
      %311 = vmatpush1.msra.mxu0 0.0
      %312 = vmatprep.subr.mxu0 0.0
      %313 = vmatpush1.msra.mxu0 0.0
      %314 = vmatprep.subr.mxu0 0.0
      %315 = vmatpush1.msra.mxu0 0.0
      %316 = vmatprep.subr.mxu0 0.0
      %317 = vmatpush1.msra.mxu0 0.0
      %318 = vmatprep.subr.mxu0 0.0
      %319 = vmatpush1.msra.mxu0 0.0
      %320 = vmatprep.subr.mxu0 0.0
      %321 = vmatpush1.msra.mxu0 0.0
      %322 = vmatprep.subr.mxu0 0.0
      %323 = vmatpush1.msra.mxu0 0.0
      %324 = vmatprep.subr.mxu0 0.0
      %325 = vmatpush1.msra.mxu0 0.0
      %326 = vmatprep.subr.mxu0 0.0
      %327 = vmatpush1.msra.mxu0 0.0
      %328 = vmatprep.subr.mxu0 0.0
      %329 = vmatpush1.msra.mxu0 0.0
      %330 = vmatprep.subr.mxu0 0.0
      %331 = vmatpush1.msra.mxu0 0.0
      %332 = vmatprep.subr.mxu0 0.0
      %333 = vmatpush1.msra.mxu0 0.0
      %334 = vmatprep.subr.mxu0 0.0
      %335 = vmatpush1.msra.mxu0 0.0
      %336 = vmatprep.subr.mxu0 0.0
      %337 = vmatpush1.msra.mxu0 0.0
      %338 = vmatprep.subr.mxu0 0.0
      %339 = vmatpush1.msra.mxu0 0.0
      %340 = vmatprep.subr.mxu0 0.0
      %341 = vmatpush1.msra.mxu0 0.0
      %342 = vmatprep.subr.mxu0 0.0
      %343 = vmatpush1.msra.mxu0 0.0
      %344 = vmatprep.mubr.f32.mxu0 0.0
      %345 = vmatmul.mubr.f32.gmra.mrb[0].mxu0 %v278
      %v346 = vpop.f32.mrb[0].mxu0
      %v347 = vadd.f32 %v274, %v346
      %v348 = vpop.f32.mrb[0].mxu0
      %349 = vdwg.mxu0
      %v350 = vld [vmem:[%s3] sm:$0x1]
      %v352 = vlaneseq
      %v353 = vshrl.u32 %v352, 7
      %v354 = vsub.s32 0, %v353
      %v355 = vrot.slane %v350, %v354
      %v357 = vadd.f32 %v347, %v355
      %vm358 = vcmask 31744
      %v359 = vsel %vm358, %v357, -inf
      %360 = vmax.xlane.f32.xlu0 %v359
      %v361 = vpop.xlane.xlu0 %360
      %v362 = vsub.f32 %v357, %v361
      %v363 = vmul.f32 %v362, 1.442695
      %v364 = vpow.pop %v363
      %v365 = vsel %vm358, %v364, 0.0
      %366 = vadd.xlane.f32.xlu0 %v365
      %v367 = vpop.xlane.xlu0 %366
      %v368 = vrcp.pop %v367
      %v369 = vmul.f32 %v364, %v368
      %370 = vst.msk [vmem:[%s192] sm:$0xff] %vm358, %v369
      %p371 = scmp.lt.s32.totalorder %s15, 1
      %s372 = scalar_select %p371, %s15, 1
      %s373 = smul.addr %s372, 8
      %s374 = scalar_lea.vmem %s4, %s373
      // Predicated region
      $region37: #{tpu_custom_call.1} parent=35 // pred_check
        %p375 = pneg %p122
      $region38: #{tpu_custom_call.1} parent=35 // pred_check_branch
        %377 = sbr.rel (%p375) target = $region40
      $region39: #{tpu_custom_call.1} parent=35 // pred_region
        _
      $region40: #{tpu_custom_call.1} parent=35 // pred_fallthru
        _
    $region36: #{tpu_custom_call.1} parent=5 // pred_fallthru
      _
    %p378 = scmp.le.s32.totalorder 2, %s10
    // Predicated region
    $region41: #{tpu_custom_call.1} parent=5 // pred_check
      %p379 = pneg %p378
    $region42: #{tpu_custom_call.1} parent=5 // pred_check_branch
      %381 = sbr.rel (%p379) target = $region44
    $region43: #{tpu_custom_call.1} parent=5 // pred_region
      %s382 = ssub.s32 %s10, 2
      // Predicated region
      $region45: #{tpu_custom_call.1} parent=43 // pred_check
        %p383 = pneg %p128
      $region46: #{tpu_custom_call.1} parent=43 // pred_check_branch
        %385 = sbr.rel (%p383) target = $region48
      $region47: #{tpu_custom_call.1} parent=43 // pred_region
        %p386 = scmp.lt.s32.totalorder %s16, 1
        %s387 = scalar_select %p386, %s16, 1
        %s388 = smul.addr %s387, 8
        %s389 = scalar_lea.vmem %s4, %s388
      $region48: #{tpu_custom_call.1} parent=43 // pred_fallthru
        _
    $region44: #{tpu_custom_call.1} parent=5 // pred_fallthru
      _
  $region6: #{tpu_custom_call.1} parent=0 // loop_footer
    %s14 = sadd.s32 1, %s10
  $region7: #{tpu_custom_call.1} parent=0 // loop_footer_branch
    %9 = sbr.rel target = $region3
  $region8: #{tpu_custom_call.1} parent=0 // loop_exit
    _

</llo_original>
